<compile_context>
chip_gen: v7x
topology: tpu7x:2x2x1
jax: 0.10.0
libtpu: 0.0.40
codegen_flags: <defaults>
</compile_context>

<pallas_src>
from functools import partial

import jax
import jax.numpy as jnp
from jax import lax
from jax.experimental import pallas as pl
from jax.experimental.pallas import tpu as pltpu

LANE_CHUNK = 512  # lanes per inner-loop chunk; keeps all intermediates in vregs


def _round_up(v, m):
    return ((v + m - 1) // m) * m


def iris_mlp_kernel(x_ref, w1_ref, b1_ref, w2_ref, b2_ref, w3_ref, b3_ref, o_ref):
    # Tiny weights: loaded once per grid step, live in vregs across the chunk loop.
    w1 = w1_ref[...]      # (10, 3)
    b1 = b1_ref[...]      # (10, 1)
    w2 = w2_ref[...]      # (30, 10)
    b2 = b2_ref[...]      # (30, 1)
    w3 = w3_ref[...]      # (30, 1)   out_layer weight, pre-transposed to a column
    b3 = b3_ref[0, 0]     # scalar out_layer bias (SMEM)

    tb = x_ref.shape[1]
    n_chunks = tb // LANE_CHUNK

    def dense(w, b, h):
        # y = W @ h + b as unrolled VPU broadcast-FMAs (an MXU dot would pad the
        # tiny K/M dims up to the 128/256-wide systolic tile).
        # w: (M, K), b: (M, 1), h: (K, C)  ->  (M, C)
        acc = w[:, 0:1] * h[0:1, :]
        for k in range(1, w.shape[1]):
            acc = acc + w[:, k:k + 1] * h[k:k + 1, :]
        return acc + b

    def chunk_body(ci, carry):
        c0 = pl.multiple_of(ci * LANE_CHUNK, LANE_CHUNK)
        x = x_ref[:, pl.ds(c0, LANE_CHUNK)]                      # (3, C)
        h = jnp.maximum(dense(w1, b1, x), 0.0)                   # (10, C)
        h = jnp.maximum(dense(w2, b2, h), 0.0)                   # (30, C)
        # out_layer (30 -> 1): elementwise scale + cross-sublane reduce (XLU).
        y = jnp.sum(h * w3, axis=0, keepdims=True) + b3          # (1, C)
        o_ref[:, pl.ds(c0, LANE_CHUNK)] = y
        return carry

    lax.fori_loop(0, n_chunks, chunk_body, 0)


@partial(jax.jit, static_argnames=("tb",))
def iris_reg_model(x, params, *, tb=32768):
    """x: (B, 3) float32.  params in PyTorch nn.Linear layout:
       w1 (10,3), b1 (10,1), w2 (30,10), b2 (30,1), w3 (1,30), b3 (1,1)."""
    w1, b1 = params["w1"], params["b1"]
    w2, b2 = params["w2"], params["b2"]
    w3, b3 = params["w3"], params["b3"]
    w3_col = w3.T                                                # (30, 1), trivial

    B = x.shape[0]

    # Tile choice: as big as requested (amortizes per-step overhead, large
    # contiguous DMAs) but balanced so the grid keeps >= 4 steps (both v7x TCs
    # get work) and padding waste stays small.  Always a multiple of LANE_CHUNK
    # (hence of 128 lanes).
    tb_cap = _round_up(max(tb, LANE_CHUNK), LANE_CHUNK)
    n_target = max(4, pl.cdiv(B, tb_cap))
    tb = min(tb_cap, _round_up(pl.cdiv(B, n_target), LANE_CHUNK))
    n_tiles = pl.cdiv(B, tb)
    b_pad = n_tiles * tb

    # Layout plumbing only: batch onto the lane axis; transpose + tail pad fuse
    # into a single XLA pass under jit.
    x_t = jnp.pad(x.T, ((0, 0), (0, b_pad - B)))                 # (3, b_pad)

    # Full-array blocks with constant index_map -> fetched once, VMEM-resident.
    def resident(arr):
        return pl.BlockSpec(arr.shape, lambda i: (0, 0))

    out_t = pl.pallas_call(
        iris_mlp_kernel,
        out_shape=jax.ShapeDtypeStruct((1, b_pad), jnp.float32),
        grid=(n_tiles,),
        in_specs=[
            pl.BlockSpec((3, tb), lambda i: (0, i)),             # x: batch-tiled, lane-dense
            resident(w1), resident(b1),
            resident(w2), resident(b2),
            resident(w3_col),
            pl.BlockSpec(memory_space=pltpu.MemorySpace.SMEM),   # scalar out bias
        ],
        out_specs=pl.BlockSpec((1, tb), lambda i: (0, i)),       # lane-dense output tile
        compiler_params=pltpu.CompilerParams(
            dimension_semantics=("parallel",),                   # batch-parallel (v7x 2 TCs)
        ),
    )(x_t, w1, b1, w2, b2, w3_col, b3)

    return out_t[:, :B].T                                        # (B, 1)


def init_params(key):
    """Deterministic init mimicking nn.Linear default (U(-1/sqrt(fan_in), +...)).
       Weights stored in PyTorch layout [out, in]; biases as column vectors."""
    def linear(key, fan_in, fan_out):
        kw, kb = jax.random.split(key)
        bound = 1.0 / jnp.sqrt(float(fan_in))
        w = jax.random.uniform(kw, (fan_out, fan_in), jnp.float32, -bound, bound)
        b = jax.random.uniform(kb, (fan_out, 1), jnp.float32, -bound, bound)
        return w, b

    k1, k2, k3 = jax.random.split(key, 3)
    w1, b1 = linear(k1, 3, 10)
    w2, b2 = linear(k2, 10, 30)
    w3, b3 = linear(k3, 30, 1)
    return {"w1": w1, "b1": b1, "w2": w2, "b2": b2, "w3": w3, "b3": b3}


def reference_forward(x, params):
    hp = lax.Precision.HIGHEST
    y = jnp.maximum(jnp.dot(x, params["w1"].T, precision=hp) + params["b1"].T, 0.0)
    y = jnp.maximum(jnp.dot(y, params["w2"].T, precision=hp) + params["b2"].T, 0.0)
    return jnp.dot(y, params["w3"].T, precision=hp) + params["b3"].T


if __name__ == "__main__":
    key = jax.random.PRNGKey(0)
    kx1, kx2, kp = jax.random.split(key, 3)
    params = init_params(kp)

    # Case 1: 4-step grid + multi-chunk inner loop (tb clamps to 1024 here).
    x1 = jax.random.normal(kx1, (4096, 3), jnp.float32)
    out1 = jax.block_until_ready(iris_reg_model(x1, params))
    ref1 = reference_forward(x1, params)
    assert out1.shape == (4096, 1)
    assert jnp.allclose(out1, ref1, atol=2e-5, rtol=2e-5)

    # Case 2: small, non-tile-multiple batch -> exercises the padded tail.
    x2 = jax.random.normal(kx2, (200, 3), jnp.float32)
    out2 = jax.block_until_ready(iris_reg_model(x2, params))
    ref2 = reference_forward(x2, params)
    assert out2.shape == (200, 1)
    assert jnp.allclose(out2, ref2, atol=2e-5, rtol=2e-5)

    print("KERNEL_OK")
</pallas_src>

<mosaic_0001>
module attributes {stable_mosaic.version = 11 : i64} {
  func.func @iris_mlp_kernel(%arg0: i32, %arg1: memref<3x1024xf32, #tpu.memory_space<vmem>>, %arg2: memref<10x3xf32, #tpu.memory_space<vmem>>, %arg3: memref<10x1xf32, #tpu.memory_space<vmem>>, %arg4: memref<30x10xf32, #tpu.memory_space<vmem>>, %arg5: memref<30x1xf32, #tpu.memory_space<vmem>>, %arg6: memref<30x1xf32, #tpu.memory_space<vmem>>, %arg7: memref<1x1xf32, #tpu.memory_space<smem>>, %arg8: memref<1x1024xf32, #tpu.memory_space<vmem>>) attributes {dimension_semantics = [#tpu.dimension_semantics<parallel>], iteration_bounds = array<i64: 4>, scalar_prefetch = 0 : i64, scratch_operands = 0 : i64, tpu.core_type = #tpu.core_type<tc>, window_params = [{transform_indices = @transform_0, window_bounds = array<i64: 3, 1024>}, {pipeline_mode = #tpu.pipeline_mode<synchronous>, transform_indices = @transform_1, window_bounds = array<i64: 10, 3>}, {pipeline_mode = #tpu.pipeline_mode<synchronous>, transform_indices = @transform_2, window_bounds = array<i64: 10, 1>}, {pipeline_mode = #tpu.pipeline_mode<synchronous>, transform_indices = @transform_3, window_bounds = array<i64: 30, 10>}, {pipeline_mode = #tpu.pipeline_mode<synchronous>, transform_indices = @transform_4, window_bounds = array<i64: 30, 1>}, {pipeline_mode = #tpu.pipeline_mode<synchronous>, transform_indices = @transform_5, window_bounds = array<i64: 30, 1>}, {transform_indices = @transform_6, window_bounds = array<i64: 1, 1>}, {transform_indices = @transform_7, window_bounds = array<i64: 1, 1024>}]} {
    %c0 = arith.constant 0 : index
    %c0_0 = arith.constant 0 : index
    %0 = vector.load %arg2[%c0, %c0_0] : memref<10x3xf32, #tpu.memory_space<vmem>>, vector<10x3xf32>
    %c0_1 = arith.constant 0 : index
    %c0_2 = arith.constant 0 : index
    %1 = vector.load %arg3[%c0_1, %c0_2] : memref<10x1xf32, #tpu.memory_space<vmem>>, vector<10x1xf32>
    %c0_3 = arith.constant 0 : index
    %c0_4 = arith.constant 0 : index
    %2 = vector.load %arg4[%c0_3, %c0_4] : memref<30x10xf32, #tpu.memory_space<vmem>>, vector<30x10xf32>
    %c0_5 = arith.constant 0 : index
    %c0_6 = arith.constant 0 : index
    %3 = vector.load %arg5[%c0_5, %c0_6] : memref<30x1xf32, #tpu.memory_space<vmem>>, vector<30x1xf32>
    %c0_7 = arith.constant 0 : index
    %c0_8 = arith.constant 0 : index
    %4 = vector.load %arg6[%c0_7, %c0_8] : memref<30x1xf32, #tpu.memory_space<vmem>>, vector<30x1xf32>
    %c0_9 = arith.constant 0 : index
    %c0_10 = arith.constant 0 : index
    %5 = memref.load %arg7[%c0_9, %c0_10] : memref<1x1xf32, #tpu.memory_space<smem>>
    %c0_i32 = arith.constant 0 : i32
    %c2_i32 = arith.constant 2 : i32
    %6 = arith.addi %c0_i32, %c2_i32 : i32
    %c1_i32 = arith.constant 1 : i32
    scf.for %arg9 = %c0_i32 to %6 step %c1_i32  : i32 {
      %c512_i32 = arith.constant 512 : i32
      %7 = arith.muli %arg9, %c512_i32 : i32
      %8 = tpu.assume_multiple %7, 512 : i32
      %c0_12 = arith.constant 0 : index
      %9 = arith.index_cast %8 : i32 to index
      %10 = vector.load %arg1[%c0_12, %9] : memref<3x1024xf32, #tpu.memory_space<vmem>>, vector<3x512xf32>
      %11 = vector.extract_strided_slice %0 {offsets = [0, 0], sizes = [10, 1], strides = [1, 1]} : vector<10x3xf32> to vector<10x1xf32>
      %12 = vector.extract_strided_slice %10 {offsets = [0, 0], sizes = [1, 512], strides = [1, 1]} : vector<3x512xf32> to vector<1x512xf32>
      %13 = vector.broadcast %11 : vector<10x1xf32> to vector<10x512xf32>
      %14 = vector.broadcast %12 : vector<1x512xf32> to vector<10x512xf32>
      %15 = arith.mulf %13, %14 : vector<10x512xf32>
      %16 = vector.extract_strided_slice %0 {offsets = [0, 1], sizes = [10, 1], strides = [1, 1]} : vector<10x3xf32> to vector<10x1xf32>
      %17 = vector.extract_strided_slice %10 {offsets = [1, 0], sizes = [1, 512], strides = [1, 1]} : vector<3x512xf32> to vector<1x512xf32>
      %18 = vector.broadcast %16 : vector<10x1xf32> to vector<10x512xf32>
      %19 = vector.broadcast %17 : vector<1x512xf32> to vector<10x512xf32>
      %20 = arith.mulf %18, %19 : vector<10x512xf32>
      %21 = arith.addf %15, %20 : vector<10x512xf32>
      %22 = vector.extract_strided_slice %0 {offsets = [0, 2], sizes = [10, 1], strides = [1, 1]} : vector<10x3xf32> to vector<10x1xf32>
      %23 = vector.extract_strided_slice %10 {offsets = [2, 0], sizes = [1, 512], strides = [1, 1]} : vector<3x512xf32> to vector<1x512xf32>
      %24 = vector.broadcast %22 : vector<10x1xf32> to vector<10x512xf32>
      %25 = vector.broadcast %23 : vector<1x512xf32> to vector<10x512xf32>
      %26 = arith.mulf %24, %25 : vector<10x512xf32>
      %27 = arith.addf %21, %26 : vector<10x512xf32>
      %28 = vector.broadcast %1 : vector<10x1xf32> to vector<10x512xf32>
      %29 = arith.addf %27, %28 : vector<10x512xf32>
      %cst = arith.constant 0.000000e+00 : f32
      %30 = vector.broadcast %cst : f32 to vector<10x512xf32>
      %31 = arith.maximumf %29, %30 : vector<10x512xf32>
      %32 = vector.extract_strided_slice %2 {offsets = [0, 0], sizes = [30, 1], strides = [1, 1]} : vector<30x10xf32> to vector<30x1xf32>
      %33 = vector.extract_strided_slice %31 {offsets = [0, 0], sizes = [1, 512], strides = [1, 1]} : vector<10x512xf32> to vector<1x512xf32>
      %34 = vector.broadcast %32 : vector<30x1xf32> to vector<30x512xf32>
      %35 = vector.broadcast %33 : vector<1x512xf32> to vector<30x512xf32>
      %36 = arith.mulf %34, %35 : vector<30x512xf32>
      %37 = vector.extract_strided_slice %2 {offsets = [0, 1], sizes = [30, 1], strides = [1, 1]} : vector<30x10xf32> to vector<30x1xf32>
      %38 = vector.extract_strided_slice %31 {offsets = [1, 0], sizes = [1, 512], strides = [1, 1]} : vector<10x512xf32> to vector<1x512xf32>
      %39 = vector.broadcast %37 : vector<30x1xf32> to vector<30x512xf32>
      %40 = vector.broadcast %38 : vector<1x512xf32> to vector<30x512xf32>
      %41 = arith.mulf %39, %40 : vector<30x512xf32>
      %42 = arith.addf %36, %41 : vector<30x512xf32>
      %43 = vector.extract_strided_slice %2 {offsets = [0, 2], sizes = [30, 1], strides = [1, 1]} : vector<30x10xf32> to vector<30x1xf32>
      %44 = vector.extract_strided_slice %31 {offsets = [2, 0], sizes = [1, 512], strides = [1, 1]} : vector<10x512xf32> to vector<1x512xf32>
      %45 = vector.broadcast %43 : vector<30x1xf32> to vector<30x512xf32>
      %46 = vector.broadcast %44 : vector<1x512xf32> to vector<30x512xf32>
      %47 = arith.mulf %45, %46 : vector<30x512xf32>
      %48 = arith.addf %42, %47 : vector<30x512xf32>
      %49 = vector.extract_strided_slice %2 {offsets = [0, 3], sizes = [30, 1], strides = [1, 1]} : vector<30x10xf32> to vector<30x1xf32>
      %50 = vector.extract_strided_slice %31 {offsets = [3, 0], sizes = [1, 512], strides = [1, 1]} : vector<10x512xf32> to vector<1x512xf32>
      %51 = vector.broadcast %49 : vector<30x1xf32> to vector<30x512xf32>
      %52 = vector.broadcast %50 : vector<1x512xf32> to vector<30x512xf32>
      %53 = arith.mulf %51, %52 : vector<30x512xf32>
      %54 = arith.addf %48, %53 : vector<30x512xf32>
      %55 = vector.extract_strided_slice %2 {offsets = [0, 4], sizes = [30, 1], strides = [1, 1]} : vector<30x10xf32> to vector<30x1xf32>
      %56 = vector.extract_strided_slice %31 {offsets = [4, 0], sizes = [1, 512], strides = [1, 1]} : vector<10x512xf32> to vector<1x512xf32>
      %57 = vector.broadcast %55 : vector<30x1xf32> to vector<30x512xf32>
      %58 = vector.broadcast %56 : vector<1x512xf32> to vector<30x512xf32>
      %59 = arith.mulf %57, %58 : vector<30x512xf32>
      %60 = arith.addf %54, %59 : vector<30x512xf32>
      %61 = vector.extract_strided_slice %2 {offsets = [0, 5], sizes = [30, 1], strides = [1, 1]} : vector<30x10xf32> to vector<30x1xf32>
      %62 = vector.extract_strided_slice %31 {offsets = [5, 0], sizes = [1, 512], strides = [1, 1]} : vector<10x512xf32> to vector<1x512xf32>
      %63 = vector.broadcast %61 : vector<30x1xf32> to vector<30x512xf32>
      %64 = vector.broadcast %62 : vector<1x512xf32> to vector<30x512xf32>
      %65 = arith.mulf %63, %64 : vector<30x512xf32>
      %66 = arith.addf %60, %65 : vector<30x512xf32>
      %67 = vector.extract_strided_slice %2 {offsets = [0, 6], sizes = [30, 1], strides = [1, 1]} : vector<30x10xf32> to vector<30x1xf32>
      %68 = vector.extract_strided_slice %31 {offsets = [6, 0], sizes = [1, 512], strides = [1, 1]} : vector<10x512xf32> to vector<1x512xf32>
      %69 = vector.broadcast %67 : vector<30x1xf32> to vector<30x512xf32>
      %70 = vector.broadcast %68 : vector<1x512xf32> to vector<30x512xf32>
      %71 = arith.mulf %69, %70 : vector<30x512xf32>
      %72 = arith.addf %66, %71 : vector<30x512xf32>
      %73 = vector.extract_strided_slice %2 {offsets = [0, 7], sizes = [30, 1], strides = [1, 1]} : vector<30x10xf32> to vector<30x1xf32>
      %74 = vector.extract_strided_slice %31 {offsets = [7, 0], sizes = [1, 512], strides = [1, 1]} : vector<10x512xf32> to vector<1x512xf32>
      %75 = vector.broadcast %73 : vector<30x1xf32> to vector<30x512xf32>
      %76 = vector.broadcast %74 : vector<1x512xf32> to vector<30x512xf32>
      %77 = arith.mulf %75, %76 : vector<30x512xf32>
      %78 = arith.addf %72, %77 : vector<30x512xf32>
      %79 = vector.extract_strided_slice %2 {offsets = [0, 8], sizes = [30, 1], strides = [1, 1]} : vector<30x10xf32> to vector<30x1xf32>
      %80 = vector.extract_strided_slice %31 {offsets = [8, 0], sizes = [1, 512], strides = [1, 1]} : vector<10x512xf32> to vector<1x512xf32>
      %81 = vector.broadcast %79 : vector<30x1xf32> to vector<30x512xf32>
      %82 = vector.broadcast %80 : vector<1x512xf32> to vector<30x512xf32>
      %83 = arith.mulf %81, %82 : vector<30x512xf32>
      %84 = arith.addf %78, %83 : vector<30x512xf32>
      %85 = vector.extract_strided_slice %2 {offsets = [0, 9], sizes = [30, 1], strides = [1, 1]} : vector<30x10xf32> to vector<30x1xf32>
      %86 = vector.extract_strided_slice %31 {offsets = [9, 0], sizes = [1, 512], strides = [1, 1]} : vector<10x512xf32> to vector<1x512xf32>
      %87 = vector.broadcast %85 : vector<30x1xf32> to vector<30x512xf32>
      %88 = vector.broadcast %86 : vector<1x512xf32> to vector<30x512xf32>
      %89 = arith.mulf %87, %88 : vector<30x512xf32>
      %90 = arith.addf %84, %89 : vector<30x512xf32>
      %91 = vector.broadcast %3 : vector<30x1xf32> to vector<30x512xf32>
      %92 = arith.addf %90, %91 : vector<30x512xf32>
      %cst_13 = arith.constant 0.000000e+00 : f32
      %93 = vector.broadcast %cst_13 : f32 to vector<30x512xf32>
      %94 = arith.maximumf %92, %93 : vector<30x512xf32>
      %95 = vector.broadcast %4 : vector<30x1xf32> to vector<30x512xf32>
      %96 = arith.mulf %94, %95 : vector<30x512xf32>
      %cst_14 = arith.constant dense<0.000000e+00> : vector<512xf32>
      %97 = vector.multi_reduction <add>, %96, %cst_14 [0] : vector<30x512xf32> to vector<512xf32>
      %98 = vector.shape_cast %97 : vector<512xf32> to vector<1x512xf32>
      %99 = vector.broadcast %5 : f32 to vector<1x512xf32>
      %100 = arith.addf %98, %99 : vector<1x512xf32>
      %c0_15 = arith.constant 0 : index
      %101 = arith.index_cast %8 : i32 to index
      %102 = vector.load %arg8[%c0_15, %101] : memref<1x1024xf32, #tpu.memory_space<vmem>>, vector<1x512xf32>
      tpu.vector_store %arg8[%c0_15, %101], %100 {strides = array<i32>} : memref<1x1024xf32, #tpu.memory_space<vmem>>, vector<1x512xf32>,
    }
    %c2_i32_11 = arith.constant 2 : i32
    return
  }
  func.func @transform_0(%arg0: i32) -> (i32, i32) {
    %c0_i32 = arith.constant 0 : i32
    %c0_i32_0 = arith.constant 0 : i32
    return %c0_i32, %arg0 : i32, i32
  }
  func.func @transform_1(%arg0: i32) -> (i32, i32) {
    %c0_i32 = arith.constant 0 : i32
    %c0_i32_0 = arith.constant 0 : i32
    %c0_i32_1 = arith.constant 0 : i32
    return %c0_i32, %c0_i32_0 : i32, i32
  }
  func.func @transform_2(%arg0: i32) -> (i32, i32) {
    %c0_i32 = arith.constant 0 : i32
    %c0_i32_0 = arith.constant 0 : i32
    %c0_i32_1 = arith.constant 0 : i32
    return %c0_i32, %c0_i32_0 : i32, i32
  }
  func.func @transform_3(%arg0: i32) -> (i32, i32) {
    %c0_i32 = arith.constant 0 : i32
    %c0_i32_0 = arith.constant 0 : i32
    %c0_i32_1 = arith.constant 0 : i32
    return %c0_i32, %c0_i32_0 : i32, i32
  }
  func.func @transform_4(%arg0: i32) -> (i32, i32) {
    %c0_i32 = arith.constant 0 : i32
    %c0_i32_0 = arith.constant 0 : i32
    %c0_i32_1 = arith.constant 0 : i32
    return %c0_i32, %c0_i32_0 : i32, i32
  }
  func.func @transform_5(%arg0: i32) -> (i32, i32) {
    %c0_i32 = arith.constant 0 : i32
    %c0_i32_0 = arith.constant 0 : i32
    %c0_i32_1 = arith.constant 0 : i32
    return %c0_i32, %c0_i32_0 : i32, i32
  }
  func.func @transform_6(%arg0: i32) -> (i32, i32) {
    %c0_i32 = arith.constant 0 : i32
    %c0_i32_0 = arith.constant 0 : i32
    %c0_i32_1 = arith.constant 0 : i32
    return %c0_i32, %c0_i32_0 : i32, i32
  }
  func.func @transform_7(%arg0: i32) -> (i32, i32) {
    %c0_i32 = arith.constant 0 : i32
    %c0_i32_0 = arith.constant 0 : i32
    return %c0_i32, %arg0 : i32, i32
  }
}

</mosaic_0001>

<llo_original>
// kernel: iris_reg_model.1
$region0: #{iris_reg_model.1}
  #allocation0 [shape = 'u32[]', space=smem, size = 0x4, offset = 0x4, fixed_abs, tag = 'smem constant byte address 0x4 - core index']
  #allocation1 [shape = 'u32[144,128]{1,0:T(1,128)}', space=vmem, size = 0x12000, scoped, tag = 'internal scratch']
  #allocation2 [shape = 'f32[1,1]{1,0:T(1,128)S(6)}', space=smem, size = 0x200, scoped, tag = 'scoped memory for iris_reg_model.1']
  %s0 = inlined_call_operand.vmem [shape: f32[3,4096], index: 0, kind: input, shape index: {}]
  %s1 = inlined_call_operand.vmem [shape: f32[10,3], index: 1, kind: input, shape index: {}]
  %s2 = inlined_call_operand.vmem [shape: f32[10,1], index: 2, kind: input, shape index: {}]
  %s3 = inlined_call_operand.vmem [shape: f32[30,10], index: 3, kind: input, shape index: {}]
  %s4 = inlined_call_operand.vmem [shape: f32[30,1], index: 4, kind: input, shape index: {}]
  %s5 = inlined_call_operand.vmem [shape: f32[30,1], index: 5, kind: input, shape index: {}]
  %s6 = inlined_call_operand.<no memory space> [shape: f32[1,1], index: 6, kind: input, shape index: {}]
  %s7 = inlined_call_operand.hbm [shape: f32[1,4096], index: 7, kind: output, shape index: {}]
  %s8 = sld [smem:[#allocation0]]
  $region68: #{iris_reg_model.1} parent=0
    _
  %s10 = ssub.s32 1, %s8
  %s11 = scalar_select 0, %s10, %s8
  %12 = sst [smem:[#allocation2]] %s6
  $region1: #{iris_reg_model.1} parent=0
    #allocation3 [shape = 'u8[8192]{0}', space=vmem, size = 0x2000, scoped, tag = 'output window, operand 0']
    #allocation4 [shape = 's32[2]{0}', space=sflag, size = 0x8, scoped, tag = 'scoped memory for iris_reg_model.1']
    %13 = vsyncpa [#allocation4], 0
    %s14 = scalar_lea.sflag [#allocation4], 1
    %15 = vsyncpa %s14, 0
    loop: start=0, step=1, limit=6
    $region2: #{iris_reg_model.1} parent=1 // loop_pre_header
      _
    $region3: #{iris_reg_model.1} parent=1 // loop_header
      %s17 = sphi 0, %s21
      %p18 = scmp.ge.s32.totalorder %s17, 6
      %s27 = sphi 0, %s29
      %s30 = sphi 0, %s27
      %s31 = sphi 0, %s30
      %s47 = sphi 0, %s31
      %s51 = sphi 0, %s51
      %s53 = sphi 0, %s51
      %s54 = sphi 0, %s53
      %s68 = sphi 0, %s54
      %s72 = sphi 0, %s72
      %s74 = sphi 0, %s72
      %s75 = sphi 0, %s74
      %s89 = sphi 0, %s75
      %s93 = sphi 0, %s93
      %s95 = sphi 0, %s93
      %s96 = sphi 0, %s95
      %s110 = sphi 0, %s96
      %s114 = sphi 0, %s114
      %s116 = sphi 0, %s114
      %s117 = sphi 0, %s116
      %s131 = sphi 0, %s117
      %s135 = sphi 0, %s135
      %s137 = sphi 0, %s135
      %s138 = sphi 0, %s137
      %s152 = sphi 0, %s138
      %s156 = sphi 0, %s156
      %s158 = sphi 0, %s156
      %s159 = sphi 0, %s158
      %s173 = sphi 0, %s159
      %s179 = sphi 0, %s181
      %s182 = sphi 0, %s179
      %s183 = sphi 0, %s182
      %s199 = sphi 0, %s183
    $region4: #{iris_reg_model.1} parent=1 // loop_header_branch
      %20 = sbr.rel (%p18) target = $region8
    $region5: #{iris_reg_model.1} parent=1 // loop_body
      %s22 = ssub.s32 %s17, 1
      %s23 = ssub.s32 %s17, 2
      %s24 = sadd.s32 %s17, 1
      %s25 = ssub.s32 %s17, %s24
      %p26 = scmp.eq.s32.totalorder %s25, 0
      %s28 = sadd.s32 %s27, 1
      %s29 = scalar_select %p26, %s27, %s28
      %p32 = pneg %p26
      %p33 = scmp.eq.s32.totalorder %s17, 3
      %p34 = por %p32, %p33
      %p35 = scmp.ne.s32.totalorder %s27, %s30
      %p36 = scmp.eq.s32.totalorder %s17, 0
      %p37 = por %p35, %p36
      %p38 = scmp.ne.s32.totalorder %s27, %s30
      %p39 = scmp.eq.s32.totalorder %s22, 3
      %p40 = por %p38, %p39
      %p41 = scmp.ne.s32.totalorder %s30, %s31
      %p42 = scmp.eq.s32.totalorder %s22, 0
      %p43 = por %p41, %p42
      %p44 = scmp.ne.s32.totalorder %s30, %s31
      %p45 = scmp.eq.s32.totalorder %s23, 3
      %p46 = por %p44, %p45
      %p48 = scmp.ne.s32.totalorder %s31, %s47
      %p49 = scmp.eq.s32.totalorder %s23, 0
      %p50 = por %p48, %p49
      %s52 = sadd.s32 %s51, 1
      %p55 = scmp.eq.s32.totalorder %s17, 3
      %p56 = scmp.ne.s32.totalorder %s51, %s53
      %p57 = scmp.eq.s32.totalorder %s17, 0
      %p58 = por %p56, %p57
      %p59 = scmp.ne.s32.totalorder %s51, %s53
      %p60 = scmp.eq.s32.totalorder %s22, 3
      %p61 = por %p59, %p60
      %p62 = scmp.ne.s32.totalorder %s53, %s54
      %p63 = scmp.eq.s32.totalorder %s22, 0
      %p64 = por %p62, %p63
      %p65 = scmp.ne.s32.totalorder %s53, %s54
      %p66 = scmp.eq.s32.totalorder %s23, 3
      %p67 = por %p65, %p66
      %p69 = scmp.ne.s32.totalorder %s54, %s68
      %p70 = scmp.eq.s32.totalorder %s23, 0
      %p71 = por %p69, %p70
      %s73 = sadd.s32 %s72, 1
      %p76 = scmp.eq.s32.totalorder %s17, 3
      %p77 = scmp.ne.s32.totalorder %s72, %s74
      %p78 = scmp.eq.s32.totalorder %s17, 0
      %p79 = por %p77, %p78
      %p80 = scmp.ne.s32.totalorder %s72, %s74
      %p81 = scmp.eq.s32.totalorder %s22, 3
      %p82 = por %p80, %p81
      %p83 = scmp.ne.s32.totalorder %s74, %s75
      %p84 = scmp.eq.s32.totalorder %s22, 0
      %p85 = por %p83, %p84
      %p86 = scmp.ne.s32.totalorder %s74, %s75
      %p87 = scmp.eq.s32.totalorder %s23, 3
      %p88 = por %p86, %p87
      %p90 = scmp.ne.s32.totalorder %s75, %s89
      %p91 = scmp.eq.s32.totalorder %s23, 0
      %p92 = por %p90, %p91
      %s94 = sadd.s32 %s93, 1
      %p97 = scmp.eq.s32.totalorder %s17, 3
      %p98 = scmp.ne.s32.totalorder %s93, %s95
      %p99 = scmp.eq.s32.totalorder %s17, 0
      %p100 = por %p98, %p99
      %p101 = scmp.ne.s32.totalorder %s93, %s95
      %p102 = scmp.eq.s32.totalorder %s22, 3
      %p103 = por %p101, %p102
      %p104 = scmp.ne.s32.totalorder %s95, %s96
      %p105 = scmp.eq.s32.totalorder %s22, 0
      %p106 = por %p104, %p105
      %p107 = scmp.ne.s32.totalorder %s95, %s96
      %p108 = scmp.eq.s32.totalorder %s23, 3
      %p109 = por %p107, %p108
      %p111 = scmp.ne.s32.totalorder %s96, %s110
      %p112 = scmp.eq.s32.totalorder %s23, 0
      %p113 = por %p111, %p112
      %s115 = sadd.s32 %s114, 1
      %p118 = scmp.eq.s32.totalorder %s17, 3
      %p119 = scmp.ne.s32.totalorder %s114, %s116
      %p120 = scmp.eq.s32.totalorder %s17, 0
      %p121 = por %p119, %p120
      %p122 = scmp.ne.s32.totalorder %s114, %s116
      %p123 = scmp.eq.s32.totalorder %s22, 3
      %p124 = por %p122, %p123
      %p125 = scmp.ne.s32.totalorder %s116, %s117
      %p126 = scmp.eq.s32.totalorder %s22, 0
      %p127 = por %p125, %p126
      %p128 = scmp.ne.s32.totalorder %s116, %s117
      %p129 = scmp.eq.s32.totalorder %s23, 3
      %p130 = por %p128, %p129
      %p132 = scmp.ne.s32.totalorder %s117, %s131
      %p133 = scmp.eq.s32.totalorder %s23, 0
      %p134 = por %p132, %p133
      %s136 = sadd.s32 %s135, 1
      %p139 = scmp.eq.s32.totalorder %s17, 3
      %p140 = scmp.ne.s32.totalorder %s135, %s137
      %p141 = scmp.eq.s32.totalorder %s17, 0
      %p142 = por %p140, %p141
      %p143 = scmp.ne.s32.totalorder %s135, %s137
      %p144 = scmp.eq.s32.totalorder %s22, 3
      %p145 = por %p143, %p144
      %p146 = scmp.ne.s32.totalorder %s137, %s138
      %p147 = scmp.eq.s32.totalorder %s22, 0
      %p148 = por %p146, %p147
      %p149 = scmp.ne.s32.totalorder %s137, %s138
      %p150 = scmp.eq.s32.totalorder %s23, 3
      %p151 = por %p149, %p150
      %p153 = scmp.ne.s32.totalorder %s138, %s152
      %p154 = scmp.eq.s32.totalorder %s23, 0
      %p155 = por %p153, %p154
      %s157 = sadd.s32 %s156, 1
      %p160 = scmp.eq.s32.totalorder %s17, 3
      %p161 = scmp.ne.s32.totalorder %s156, %s158
      %p162 = scmp.eq.s32.totalorder %s17, 0
      %p163 = por %p161, %p162
      %p164 = scmp.ne.s32.totalorder %s156, %s158
      %p165 = scmp.eq.s32.totalorder %s22, 3
      %p166 = por %p164, %p165
      %p167 = scmp.ne.s32.totalorder %s158, %s159
      %p168 = scmp.eq.s32.totalorder %s22, 0
      %p169 = por %p167, %p168
      %p170 = scmp.ne.s32.totalorder %s158, %s159
      %p171 = scmp.eq.s32.totalorder %s23, 3
      %p172 = por %p170, %p171
      %p174 = scmp.ne.s32.totalorder %s159, %s173
      %p175 = scmp.eq.s32.totalorder %s23, 0
      %p176 = por %p174, %p175
      %s177 = ssub.s32 %s17, %s24
      %p178 = scmp.eq.s32.totalorder %s177, 0
      %s180 = sadd.s32 %s179, 1
      %s181 = scalar_select %p178, %s179, %s180
      %p184 = pneg %p178
      %p185 = scmp.eq.s32.totalorder %s17, 3
      %p186 = por %p184, %p185
      %p187 = scmp.ne.s32.totalorder %s179, %s182
      %p188 = scmp.eq.s32.totalorder %s17, 0
      %p189 = por %p187, %p188
      %p190 = scmp.ne.s32.totalorder %s179, %s182
      %p191 = scmp.eq.s32.totalorder %s22, 3
      %p192 = por %p190, %p191
      %p193 = scmp.ne.s32.totalorder %s182, %s183
      %p194 = scmp.eq.s32.totalorder %s22, 0
      %p195 = por %p193, %p194
      %p196 = scmp.ne.s32.totalorder %s182, %s183
      %p197 = scmp.eq.s32.totalorder %s23, 3
      %p198 = por %p196, %p197
      %p200 = scmp.ne.s32.totalorder %s183, %s199
      %p201 = scmp.eq.s32.totalorder %s23, 0
      %p202 = por %p200, %p201
      %p203 = scmp.le.s32.totalorder 1, %s17
      %p204 = scmp.lt.s32.totalorder %s17, 5
      %p205 = pnand %p203, %p204
      %p206 = pneg %p205
      // Predicated region
      $region9: #{iris_reg_model.1} parent=5 // pred_check
        _
      $region10: #{iris_reg_model.1} parent=5 // pred_check_branch
        %208 = sbr.rel (%p205) target = $region12
      $region11: #{iris_reg_model.1} parent=5 // pred_region
        %s209 = ssub.s32 %s17, 1
        // Predicated region
        $region13: #{iris_reg_model.1} parent=11 // pred_check
          %p210 = pneg %p64
        $region14: #{iris_reg_model.1} parent=11 // pred_check_branch
          %212 = sbr.rel (%p210) target = $region16
        $region15: #{iris_reg_model.1} parent=11 // pred_region
          _
        $region16: #{iris_reg_model.1} parent=11 // pred_fallthru
          _
        // Predicated region
        $region17: #{iris_reg_model.1} parent=11 // pred_check
          %p213 = pneg %p85
        $region18: #{iris_reg_model.1} parent=11 // pred_check_branch
          %215 = sbr.rel (%p213) target = $region20
        $region19: #{iris_reg_model.1} parent=11 // pred_region
          _
        $region20: #{iris_reg_model.1} parent=11 // pred_fallthru
          _
        // Predicated region
        $region21: #{iris_reg_model.1} parent=11 // pred_check
          %p216 = pneg %p106
        $region22: #{iris_reg_model.1} parent=11 // pred_check_branch
          %218 = sbr.rel (%p216) target = $region24
        $region23: #{iris_reg_model.1} parent=11 // pred_region
          _
        $region24: #{iris_reg_model.1} parent=11 // pred_fallthru
          _
        // Predicated region
        $region25: #{iris_reg_model.1} parent=11 // pred_check
          %p219 = pneg %p127
        $region26: #{iris_reg_model.1} parent=11 // pred_check_branch
          %221 = sbr.rel (%p219) target = $region28
        $region27: #{iris_reg_model.1} parent=11 // pred_region
          _
        $region28: #{iris_reg_model.1} parent=11 // pred_fallthru
          _
        // Predicated region
        $region29: #{iris_reg_model.1} parent=11 // pred_check
          %p222 = pneg %p148
        $region30: #{iris_reg_model.1} parent=11 // pred_check_branch
          %224 = sbr.rel (%p222) target = $region32
        $region31: #{iris_reg_model.1} parent=11 // pred_region
          _
        $region32: #{iris_reg_model.1} parent=11 // pred_fallthru
          _
        // Predicated region
        $region33: #{iris_reg_model.1} parent=11 // pred_check
          %p225 = pneg %p169
        $region34: #{iris_reg_model.1} parent=11 // pred_check_branch
          %227 = sbr.rel (%p225) target = $region36
        $region35: #{iris_reg_model.1} parent=11 // pred_region
          _
        $region36: #{iris_reg_model.1} parent=11 // pred_fallthru
          _
      $region12: #{iris_reg_model.1} parent=5 // pred_fallthru
        _
      %p228 = scmp.lt.s32.totalorder %s17, 4
      // Predicated region
      $region37: #{iris_reg_model.1} parent=5 // pred_check
        %p229 = pneg %p228
      $region38: #{iris_reg_model.1} parent=5 // pred_check_branch
        %231 = sbr.rel (%p229) target = $region40
      $region39: #{iris_reg_model.1} parent=5 // pred_region
        // Predicated region
        $region41: #{iris_reg_model.1} parent=39 // pred_check
          %p232 = pneg %p37
        $region42: #{iris_reg_model.1} parent=39 // pred_check_branch
          %234 = sbr.rel (%p232) target = $region44
        $region43: #{iris_reg_model.1} parent=39 // pred_region
          %s235 = smul.u32 8, %s17
          %p236 = scmp.lt.s32.totalorder %s235, 31
          %s237 = scalar_select %p236, %s235, 31
          %s238 = smul.addr %s237, 4
          %s239 = scalar_lea.vmem %s0, %s238
          %s240 = smul.u32 8, %s17
        $region44: #{iris_reg_model.1} parent=39 // pred_fallthru
          _
      $region40: #{iris_reg_model.1} parent=5 // pred_fallthru
        _
      %p241 = scmp.le.s32.totalorder 1, %s17
      %p242 = scmp.lt.s32.totalorder %s17, 5
      %p243 = pnand %p241, %p242
      %p244 = pneg %p243
      // Predicated region
      $region45: #{iris_reg_model.1} parent=5 // pred_check
        _
      $region46: #{iris_reg_model.1} parent=5 // pred_check_branch
        %246 = sbr.rel (%p243) target = $region48
      $region47: #{iris_reg_model.1} parent=5 // pred_region
        %s247 = ssub.s32 %s17, 1
        %s248 = smul.u32 8, %s22
        %p249 = scmp.lt.s32.totalorder %s248, 31
        %s250 = scalar_select %p249, %s248, 31
        %s251 = smul.addr %s250, 4
        %s252 = scalar_lea.vmem %s0, %s251
        %p253 = pneg %p43
        %p254 = pneg %p40
        %p255 = pneg %p64
        %p256 = pneg %p61
        %p257 = pneg %p85
        %p258 = pneg %p82
        %p259 = pneg %p106
        %p260 = pneg %p103
        %p261 = pneg %p127
        %p262 = pneg %p124
        %p263 = pneg %p148
        %p264 = pneg %p145
        %p265 = pneg %p169
        %p266 = pneg %p166
        %p267 = pneg %p195
        %p268 = pneg %p192
        %s269 = sand.u32 %s182, 1
        %s270 = scalar_lea.sflag [#allocation4], %s269
        %s271 = sand.u32 %s182, 1
        %s272 = smul.addr %s271, 8
        %s273 = scalar_lea.vmem [#allocation3], %s272
        %s274 = smul.u32 8, %s22
        %p275 = scmp.lt.s32.totalorder %s274, 31
        %s276 = scalar_select %p275, %s274, 31
        %s277 = smul.addr %s276, 4
        %s278 = scalar_lea.vmem %s0, %s277
        %s279 = smul.u32 8, %s22
        %s280 = smul.u32 8, %s22
        %v281 = vld [vmem:[%s1] sm:$0xff]
        %v282 = vld [vmem:[%s1 + $0x8] sm:$0x3]
        %v283 = vld [vmem:[%s2] sm:$0xff]
        %v284 = vld [vmem:[%s2 + $0x8] sm:$0x3]
        %v285 = vld [vmem:[%s3] sm:$0xff]
        %v286 = vld [vmem:[%s3 + $0x8] sm:$0xff]
        %v287 = vld [vmem:[%s3 + $0x10] sm:$0xff]
        %v288 = vld [vmem:[%s3 + $0x18] sm:$0x3f]
        %v289 = vld [vmem:[%s4] sm:$0xff]
        %v290 = vld [vmem:[%s4 + $0x8] sm:$0xff]
        %v291 = vld [vmem:[%s4 + $0x10] sm:$0xff]
        %v292 = vld [vmem:[%s4 + $0x18] sm:$0x3f]
        %v293 = vld [vmem:[%s5] sm:$0xff]
        %v294 = vld [vmem:[%s5 + $0x8] sm:$0xff]
        %v295 = vld [vmem:[%s5 + $0x10] sm:$0xff]
        %v296 = vld [vmem:[%s5 + $0x18] sm:$0x3f]
        %s297 = sld [smem:[#allocation2]]
        loop: start=0, step=1, limit=2
        $region49: #{iris_reg_model.1} parent=47 // loop_pre_header
          _
        $region50: #{iris_reg_model.1} parent=47 // loop_header
          %s299 = sphi 0, %s303
          %p300 = scmp.ge.s32.totalorder %s299, 2
        $region51: #{iris_reg_model.1} parent=47 // loop_header_branch
          %302 = sbr.rel (%p300) target = $region55
        $region52: #{iris_reg_model.1} parent=47 // loop_body
          %s304 = smul.u32 %s299, 512
          %s305 = sshra.s32 %s304, 7
          %s306 = sand.u32 %s304, 127
          %s307 = smul.addr %s305, 4
          %s308 = scalar_lea.vmem %s278, %s307
          %v309 = vld [vmem:[%s308] sm:$0x77]
          %v310 = vld [vmem:[%s308 + $0x8] sm:$0x77]
          %312 = vset.pattern.permute.xlu0 0
          %313 = vperm.xlu0 %312, %v281
          %v314 = vpop.permute.xlu0 %313
          %317 = vset.pattern.permute.xlu0 0
          %318 = vperm.xlu0 %317, %v282
          %v319 = vpop.permute.xlu0 %318
          %v323 = vlaneseq
          %v324 = vshrl.u32 %v323, 7
          %v325 = vsub.s32 0, %v324
          %v326 = vrot.slane %v309, %v325
          %v327 = vlaneseq
          %v328 = vshrl.u32 %v327, 7
          %v329 = vsub.s32 4, %v328
          %v330 = vrot.slane %v309, %v329
          %v331 = vlaneseq
          %v332 = vshrl.u32 %v331, 7
          %v333 = vsub.s32 0, %v332
          %v334 = vrot.slane %v310, %v333
          %v335 = vlaneseq
          %v336 = vshrl.u32 %v335, 7
          %v337 = vsub.s32 4, %v336
          %v338 = vrot.slane %v310, %v337
          %v343 = vlaneseq
          %v344 = vshrl.u32 %v343, 7
          %v345 = vsub.s32 0, %v344
          %v346 = vrot.slane %v326, %v345
          %v347 = vlaneseq
          %v348 = vshrl.u32 %v347, 7
          %v349 = vsub.s32 0, %v348
          %v350 = vrot.slane %v330, %v349
          %v351 = vlaneseq
          %v352 = vshrl.u32 %v351, 7
          %v353 = vsub.s32 0, %v352
          %v354 = vrot.slane %v334, %v353
          %v355 = vlaneseq
          %v356 = vshrl.u32 %v355, 7
          %v357 = vsub.s32 0, %v356
          %v358 = vrot.slane %v338, %v357
          %v359 = vmul.f32 %v314, %v346
          %v360 = vmul.f32 %v314, %v350
          %v361 = vmul.f32 %v314, %v354
          %v362 = vmul.f32 %v314, %v358
          %v363 = vmul.f32 %v319, %v346
          %v364 = vmul.f32 %v319, %v350
          %v365 = vmul.f32 %v319, %v354
          %v366 = vmul.f32 %v319, %v358
          %367 = vset.pattern.permute.xlu0 1
          %368 = vperm.xlu0 %367, %v281
          %v369 = vpop.permute.xlu0 %368
          %371 = vset.pattern.permute.xlu0 1
          %372 = vperm.xlu0 %371, %v282
          %v373 = vpop.permute.xlu0 %372
          %v375 = vlaneseq
          %v376 = vshrl.u32 %v375, 7
          %v377 = vsub.s32 1, %v376
          %v378 = vrot.slane %v309, %v377
          %v379 = vlaneseq
          %v380 = vshrl.u32 %v379, 7
          %v381 = vsub.s32 5, %v380
          %v382 = vrot.slane %v309, %v381
          %v383 = vlaneseq
          %v384 = vshrl.u32 %v383, 7
          %v385 = vsub.s32 1, %v384
          %v386 = vrot.slane %v310, %v385
          %v387 = vlaneseq
          %v388 = vshrl.u32 %v387, 7
          %v389 = vsub.s32 5, %v388
          %v390 = vrot.slane %v310, %v389
          %v395 = vlaneseq
          %v396 = vshrl.u32 %v395, 7
          %v397 = vsub.s32 1, %v396
          %v398 = vrot.slane %v378, %v397
          %v399 = vlaneseq
          %v400 = vshrl.u32 %v399, 7
          %v401 = vsub.s32 1, %v400
          %v402 = vrot.slane %v382, %v401
          %v403 = vlaneseq
          %v404 = vshrl.u32 %v403, 7
          %v405 = vsub.s32 1, %v404
          %v406 = vrot.slane %v386, %v405
          %v407 = vlaneseq
          %v408 = vshrl.u32 %v407, 7
          %v409 = vsub.s32 1, %v408
          %v410 = vrot.slane %v390, %v409
          %v411 = vmul.f32 %v369, %v398
          %v412 = vmul.f32 %v369, %v402
          %v413 = vmul.f32 %v369, %v406
          %v414 = vmul.f32 %v369, %v410
          %v415 = vmul.f32 %v373, %v398
          %v416 = vmul.f32 %v373, %v402
          %v417 = vmul.f32 %v373, %v406
          %v418 = vmul.f32 %v373, %v410
          %v419 = vadd.f32 %v359, %v411
          %v420 = vadd.f32 %v360, %v412
          %v421 = vadd.f32 %v361, %v413
          %v422 = vadd.f32 %v362, %v414
          %v423 = vadd.f32 %v363, %v415
          %v424 = vadd.f32 %v364, %v416
          %v425 = vadd.f32 %v365, %v417
          %v426 = vadd.f32 %v366, %v418
          %427 = vset.pattern.permute.xlu0 2
          %428 = vperm.xlu0 %427, %v281
          %v429 = vpop.permute.xlu0 %428
          %431 = vset.pattern.permute.xlu0 2
          %432 = vperm.xlu0 %431, %v282
          %v433 = vpop.permute.xlu0 %432
          %v435 = vlaneseq
          %v436 = vshrl.u32 %v435, 7
          %v437 = vsub.s32 2, %v436
          %v438 = vrot.slane %v309, %v437
          %v439 = vlaneseq
          %v440 = vshrl.u32 %v439, 7
          %v441 = vsub.s32 6, %v440
          %v442 = vrot.slane %v309, %v441
          %v443 = vlaneseq
          %v444 = vshrl.u32 %v443, 7
          %v445 = vsub.s32 2, %v444
          %v446 = vrot.slane %v310, %v445
          %v447 = vlaneseq
          %v448 = vshrl.u32 %v447, 7
          %v449 = vsub.s32 6, %v448
          %v450 = vrot.slane %v310, %v449
          %v455 = vlaneseq
          %v456 = vshrl.u32 %v455, 7
          %v457 = vsub.s32 2, %v456
          %v458 = vrot.slane %v438, %v457
          %v459 = vlaneseq
          %v460 = vshrl.u32 %v459, 7
          %v461 = vsub.s32 2, %v460
          %v462 = vrot.slane %v442, %v461
          %v463 = vlaneseq
          %v464 = vshrl.u32 %v463, 7
          %v465 = vsub.s32 2, %v464
          %v466 = vrot.slane %v446, %v465
          %v467 = vlaneseq
          %v468 = vshrl.u32 %v467, 7
          %v469 = vsub.s32 2, %v468
          %v470 = vrot.slane %v450, %v469
          %v471 = vmul.f32 %v429, %v458
          %v472 = vmul.f32 %v429, %v462
          %v473 = vmul.f32 %v429, %v466
          %v474 = vmul.f32 %v429, %v470
          %v475 = vmul.f32 %v433, %v458
          %v476 = vmul.f32 %v433, %v462
          %v477 = vmul.f32 %v433, %v466
          %v478 = vmul.f32 %v433, %v470
          %v479 = vadd.f32 %v419, %v471
          %v480 = vadd.f32 %v420, %v472
          %v481 = vadd.f32 %v421, %v473
          %v482 = vadd.f32 %v422, %v474
          %v483 = vadd.f32 %v423, %v475
          %v484 = vadd.f32 %v424, %v476
          %v485 = vadd.f32 %v425, %v477
          %v486 = vadd.f32 %v426, %v478
          %488 = vset.pattern.permute.xlu0 0
          %489 = vperm.xlu0 %488, %v283
          %v490 = vpop.permute.xlu0 %489
          %493 = vset.pattern.permute.xlu0 0
          %494 = vperm.xlu0 %493, %v284
          %v495 = vpop.permute.xlu0 %494
          %v497 = vadd.f32 %v479, %v490
          %v498 = vadd.f32 %v480, %v490
          %v499 = vadd.f32 %v481, %v490
          %v500 = vadd.f32 %v482, %v490
          %v501 = vadd.f32 %v483, %v495
          %v502 = vadd.f32 %v484, %v495
          %v503 = vadd.f32 %v485, %v495
          %v504 = vadd.f32 %v486, %v495
          %v505 = vmax.f32 %v497, 0.0
          %v506 = vmax.f32 %v498, 0.0
          %v507 = vmax.f32 %v499, 0.0
          %v508 = vmax.f32 %v500, 0.0
          %v509 = vmax.f32 %v501, 0.0
          %v510 = vmax.f32 %v502, 0.0
          %v511 = vmax.f32 %v503, 0.0
          %v512 = vmax.f32 %v504, 0.0
          %514 = vset.pattern.permute.xlu0 0
          %515 = vperm.xlu0 %514, %v285
          %v516 = vpop.permute.xlu0 %515
          %519 = vset.pattern.permute.xlu0 0
          %520 = vperm.xlu0 %519, %v286
          %v521 = vpop.permute.xlu0 %520
          %524 = vset.pattern.permute.xlu0 0
          %525 = vperm.xlu0 %524, %v287
          %v526 = vpop.permute.xlu0 %525
          %529 = vset.pattern.permute.xlu0 0
          %530 = vperm.xlu0 %529, %v288
          %v531 = vpop.permute.xlu0 %530
          %v533 = vlaneseq
          %v534 = vshrl.u32 %v533, 7
          %v535 = vsub.s32 0, %v534
          %v536 = vrot.slane %v505, %v535
          %v537 = vlaneseq
          %v538 = vshrl.u32 %v537, 7
          %v539 = vsub.s32 0, %v538
          %v540 = vrot.slane %v506, %v539
          %v541 = vlaneseq
          %v542 = vshrl.u32 %v541, 7
          %v543 = vsub.s32 0, %v542
          %v544 = vrot.slane %v507, %v543
          %v545 = vlaneseq
          %v546 = vshrl.u32 %v545, 7
          %v547 = vsub.s32 0, %v546
          %v548 = vrot.slane %v508, %v547
          %v549 = vmul.f32 %v516, %v536
          %v550 = vmul.f32 %v516, %v540
          %v551 = vmul.f32 %v516, %v544
          %v552 = vmul.f32 %v516, %v548
          %v553 = vmul.f32 %v521, %v536
          %v554 = vmul.f32 %v521, %v540
          %v555 = vmul.f32 %v521, %v544
          %v556 = vmul.f32 %v521, %v548
          %v557 = vmul.f32 %v526, %v536
          %v558 = vmul.f32 %v526, %v540
          %v559 = vmul.f32 %v526, %v544
          %v560 = vmul.f32 %v526, %v548
          %v561 = vmul.f32 %v531, %v536
          %v562 = vmul.f32 %v531, %v540
          %v563 = vmul.f32 %v531, %v544
          %v564 = vmul.f32 %v531, %v548
          %565 = vset.pattern.permute.xlu0 1
          %566 = vperm.xlu0 %565, %v285
          %v567 = vpop.permute.xlu0 %566
          %569 = vset.pattern.permute.xlu0 1
          %570 = vperm.xlu0 %569, %v286
          %v571 = vpop.permute.xlu0 %570
          %573 = vset.pattern.permute.xlu0 1
          %574 = vperm.xlu0 %573, %v287
          %v575 = vpop.permute.xlu0 %574
          %577 = vset.pattern.permute.xlu0 1
          %578 = vperm.xlu0 %577, %v288
          %v579 = vpop.permute.xlu0 %578
          %v581 = vlaneseq
          %v582 = vshrl.u32 %v581, 7
          %v583 = vsub.s32 1, %v582
          %v584 = vrot.slane %v505, %v583
          %v585 = vlaneseq
          %v586 = vshrl.u32 %v585, 7
          %v587 = vsub.s32 1, %v586
          %v588 = vrot.slane %v506, %v587
          %v589 = vlaneseq
          %v590 = vshrl.u32 %v589, 7
          %v591 = vsub.s32 1, %v590
          %v592 = vrot.slane %v507, %v591
          %v593 = vlaneseq
          %v594 = vshrl.u32 %v593, 7
          %v595 = vsub.s32 1, %v594
          %v596 = vrot.slane %v508, %v595
          %v597 = vmul.f32 %v567, %v584
          %v598 = vmul.f32 %v567, %v588
          %v599 = vmul.f32 %v567, %v592
          %v600 = vmul.f32 %v567, %v596
          %v601 = vmul.f32 %v571, %v584
          %v602 = vmul.f32 %v571, %v588
          %v603 = vmul.f32 %v571, %v592
          %v604 = vmul.f32 %v571, %v596
          %v605 = vmul.f32 %v575, %v584
          %v606 = vmul.f32 %v575, %v588
          %v607 = vmul.f32 %v575, %v592
          %v608 = vmul.f32 %v575, %v596
          %v609 = vmul.f32 %v579, %v584
          %v610 = vmul.f32 %v579, %v588
          %v611 = vmul.f32 %v579, %v592
          %v612 = vmul.f32 %v579, %v596
          %v613 = vadd.f32 %v549, %v597
          %v614 = vadd.f32 %v550, %v598
          %v615 = vadd.f32 %v551, %v599
          %v616 = vadd.f32 %v552, %v600
          %v617 = vadd.f32 %v553, %v601
          %v618 = vadd.f32 %v554, %v602
          %v619 = vadd.f32 %v555, %v603
          %v620 = vadd.f32 %v556, %v604
          %v621 = vadd.f32 %v557, %v605
          %v622 = vadd.f32 %v558, %v606
          %v623 = vadd.f32 %v559, %v607
          %v624 = vadd.f32 %v560, %v608
          %v625 = vadd.f32 %v561, %v609
          %v626 = vadd.f32 %v562, %v610
          %v627 = vadd.f32 %v563, %v611
          %v628 = vadd.f32 %v564, %v612
          %629 = vset.pattern.permute.xlu0 2
          %630 = vperm.xlu0 %629, %v285
          %v631 = vpop.permute.xlu0 %630
          %633 = vset.pattern.permute.xlu0 2
          %634 = vperm.xlu0 %633, %v286
          %v635 = vpop.permute.xlu0 %634
          %637 = vset.pattern.permute.xlu0 2
          %638 = vperm.xlu0 %637, %v287
          %v639 = vpop.permute.xlu0 %638
          %641 = vset.pattern.permute.xlu0 2
          %642 = vperm.xlu0 %641, %v288
          %v643 = vpop.permute.xlu0 %642
          %v645 = vlaneseq
          %v646 = vshrl.u32 %v645, 7
          %v647 = vsub.s32 2, %v646
          %v648 = vrot.slane %v505, %v647
          %v649 = vlaneseq
          %v650 = vshrl.u32 %v649, 7
          %v651 = vsub.s32 2, %v650
          %v652 = vrot.slane %v506, %v651
          %v653 = vlaneseq
          %v654 = vshrl.u32 %v653, 7
          %v655 = vsub.s32 2, %v654
          %v656 = vrot.slane %v507, %v655
          %v657 = vlaneseq
          %v658 = vshrl.u32 %v657, 7
          %v659 = vsub.s32 2, %v658
          %v660 = vrot.slane %v508, %v659
          %v661 = vmul.f32 %v631, %v648
          %v662 = vmul.f32 %v631, %v652
          %v663 = vmul.f32 %v631, %v656
          %v664 = vmul.f32 %v631, %v660
          %v665 = vmul.f32 %v635, %v648
          %v666 = vmul.f32 %v635, %v652
          %v667 = vmul.f32 %v635, %v656
          %v668 = vmul.f32 %v635, %v660
          %v669 = vmul.f32 %v639, %v648
          %v670 = vmul.f32 %v639, %v652
          %v671 = vmul.f32 %v639, %v656
          %v672 = vmul.f32 %v639, %v660
          %v673 = vmul.f32 %v643, %v648
          %v674 = vmul.f32 %v643, %v652
          %v675 = vmul.f32 %v643, %v656
          %v676 = vmul.f32 %v643, %v660
          %v677 = vadd.f32 %v613, %v661
          %v678 = vadd.f32 %v614, %v662
          %v679 = vadd.f32 %v615, %v663
          %v680 = vadd.f32 %v616, %v664
          %v681 = vadd.f32 %v617, %v665
          %v682 = vadd.f32 %v618, %v666
          %v683 = vadd.f32 %v619, %v667
          %v684 = vadd.f32 %v620, %v668
          %v685 = vadd.f32 %v621, %v669
          %v686 = vadd.f32 %v622, %v670
          %v687 = vadd.f32 %v623, %v671
          %v688 = vadd.f32 %v624, %v672
          %v689 = vadd.f32 %v625, %v673
          %v690 = vadd.f32 %v626, %v674
          %v691 = vadd.f32 %v627, %v675
          %v692 = vadd.f32 %v628, %v676
          %693 = vset.pattern.permute.xlu0 3
          %694 = vperm.xlu0 %693, %v285
          %v695 = vpop.permute.xlu0 %694
          %697 = vset.pattern.permute.xlu0 3
          %698 = vperm.xlu0 %697, %v286
          %v699 = vpop.permute.xlu0 %698
          %701 = vset.pattern.permute.xlu0 3
          %702 = vperm.xlu0 %701, %v287
          %v703 = vpop.permute.xlu0 %702
          %705 = vset.pattern.permute.xlu0 3
          %706 = vperm.xlu0 %705, %v288
          %v707 = vpop.permute.xlu0 %706
          %v709 = vlaneseq
          %v710 = vshrl.u32 %v709, 7
          %v711 = vsub.s32 3, %v710
          %v712 = vrot.slane %v505, %v711
          %v713 = vlaneseq
          %v714 = vshrl.u32 %v713, 7
          %v715 = vsub.s32 3, %v714
          %v716 = vrot.slane %v506, %v715
          %v717 = vlaneseq
          %v718 = vshrl.u32 %v717, 7
          %v719 = vsub.s32 3, %v718
          %v720 = vrot.slane %v507, %v719
          %v721 = vlaneseq
          %v722 = vshrl.u32 %v721, 7
          %v723 = vsub.s32 3, %v722
          %v724 = vrot.slane %v508, %v723
          %v725 = vmul.f32 %v695, %v712
          %v726 = vmul.f32 %v695, %v716
          %v727 = vmul.f32 %v695, %v720
          %v728 = vmul.f32 %v695, %v724
          %v729 = vmul.f32 %v699, %v712
          %v730 = vmul.f32 %v699, %v716
          %v731 = vmul.f32 %v699, %v720
          %v732 = vmul.f32 %v699, %v724
          %v733 = vmul.f32 %v703, %v712
          %v734 = vmul.f32 %v703, %v716
          %v735 = vmul.f32 %v703, %v720
          %v736 = vmul.f32 %v703, %v724
          %v737 = vmul.f32 %v707, %v712
          %v738 = vmul.f32 %v707, %v716
          %v739 = vmul.f32 %v707, %v720
          %v740 = vmul.f32 %v707, %v724
          %v741 = vadd.f32 %v677, %v725
          %v742 = vadd.f32 %v678, %v726
          %v743 = vadd.f32 %v679, %v727
          %v744 = vadd.f32 %v680, %v728
          %v745 = vadd.f32 %v681, %v729
          %v746 = vadd.f32 %v682, %v730
          %v747 = vadd.f32 %v683, %v731
          %v748 = vadd.f32 %v684, %v732
          %v749 = vadd.f32 %v685, %v733
          %v750 = vadd.f32 %v686, %v734
          %v751 = vadd.f32 %v687, %v735
          %v752 = vadd.f32 %v688, %v736
          %v753 = vadd.f32 %v689, %v737
          %v754 = vadd.f32 %v690, %v738
          %v755 = vadd.f32 %v691, %v739
          %v756 = vadd.f32 %v692, %v740
          %757 = vset.pattern.permute.xlu0 4
          %758 = vperm.xlu0 %757, %v285
          %v759 = vpop.permute.xlu0 %758
          %761 = vset.pattern.permute.xlu0 4
          %762 = vperm.xlu0 %761, %v286
          %v763 = vpop.permute.xlu0 %762
          %765 = vset.pattern.permute.xlu0 4
          %766 = vperm.xlu0 %765, %v287
          %v767 = vpop.permute.xlu0 %766
          %769 = vset.pattern.permute.xlu0 4
          %770 = vperm.xlu0 %769, %v288
          %v771 = vpop.permute.xlu0 %770
          %v773 = vlaneseq
          %v774 = vshrl.u32 %v773, 7
          %v775 = vsub.s32 4, %v774
          %v776 = vrot.slane %v505, %v775
          %v777 = vlaneseq
          %v778 = vshrl.u32 %v777, 7
          %v779 = vsub.s32 4, %v778
          %v780 = vrot.slane %v506, %v779
          %v781 = vlaneseq
          %v782 = vshrl.u32 %v781, 7
          %v783 = vsub.s32 4, %v782
          %v784 = vrot.slane %v507, %v783
          %v785 = vlaneseq
          %v786 = vshrl.u32 %v785, 7
          %v787 = vsub.s32 4, %v786
          %v788 = vrot.slane %v508, %v787
          %v789 = vmul.f32 %v759, %v776
          %v790 = vmul.f32 %v759, %v780
          %v791 = vmul.f32 %v759, %v784
          %v792 = vmul.f32 %v759, %v788
          %v793 = vmul.f32 %v763, %v776
          %v794 = vmul.f32 %v763, %v780
          %v795 = vmul.f32 %v763, %v784
          %v796 = vmul.f32 %v763, %v788
          %v797 = vmul.f32 %v767, %v776
          %v798 = vmul.f32 %v767, %v780
          %v799 = vmul.f32 %v767, %v784
          %v800 = vmul.f32 %v767, %v788
          %v801 = vmul.f32 %v771, %v776
          %v802 = vmul.f32 %v771, %v780
          %v803 = vmul.f32 %v771, %v784
          %v804 = vmul.f32 %v771, %v788
          %v805 = vadd.f32 %v741, %v789
          %v806 = vadd.f32 %v742, %v790
          %v807 = vadd.f32 %v743, %v791
          %v808 = vadd.f32 %v744, %v792
          %v809 = vadd.f32 %v745, %v793
          %v810 = vadd.f32 %v746, %v794
          %v811 = vadd.f32 %v747, %v795
          %v812 = vadd.f32 %v748, %v796
          %v813 = vadd.f32 %v749, %v797
          %v814 = vadd.f32 %v750, %v798
          %v815 = vadd.f32 %v751, %v799
          %v816 = vadd.f32 %v752, %v800
          %v817 = vadd.f32 %v753, %v801
          %v818 = vadd.f32 %v754, %v802
          %v819 = vadd.f32 %v755, %v803
          %v820 = vadd.f32 %v756, %v804
          %821 = vset.pattern.permute.xlu0 5
          %822 = vperm.xlu0 %821, %v285
          %v823 = vpop.permute.xlu0 %822
          %825 = vset.pattern.permute.xlu0 5
          %826 = vperm.xlu0 %825, %v286
          %v827 = vpop.permute.xlu0 %826
          %829 = vset.pattern.permute.xlu0 5
          %830 = vperm.xlu0 %829, %v287
          %v831 = vpop.permute.xlu0 %830
          %833 = vset.pattern.permute.xlu0 5
          %834 = vperm.xlu0 %833, %v288
          %v835 = vpop.permute.xlu0 %834
          %v837 = vlaneseq
          %v838 = vshrl.u32 %v837, 7
          %v839 = vsub.s32 5, %v838
          %v840 = vrot.slane %v505, %v839
          %v841 = vlaneseq
          %v842 = vshrl.u32 %v841, 7
          %v843 = vsub.s32 5, %v842
          %v844 = vrot.slane %v506, %v843
          %v845 = vlaneseq
          %v846 = vshrl.u32 %v845, 7
          %v847 = vsub.s32 5, %v846
          %v848 = vrot.slane %v507, %v847
          %v849 = vlaneseq
          %v850 = vshrl.u32 %v849, 7
          %v851 = vsub.s32 5, %v850
          %v852 = vrot.slane %v508, %v851
          %v853 = vmul.f32 %v823, %v840
          %v854 = vmul.f32 %v823, %v844
          %v855 = vmul.f32 %v823, %v848
          %v856 = vmul.f32 %v823, %v852
          %v857 = vmul.f32 %v827, %v840
          %v858 = vmul.f32 %v827, %v844
          %v859 = vmul.f32 %v827, %v848
          %v860 = vmul.f32 %v827, %v852
          %v861 = vmul.f32 %v831, %v840
          %v862 = vmul.f32 %v831, %v844
          %v863 = vmul.f32 %v831, %v848
          %v864 = vmul.f32 %v831, %v852
          %v865 = vmul.f32 %v835, %v840
          %v866 = vmul.f32 %v835, %v844
          %v867 = vmul.f32 %v835, %v848
          %v868 = vmul.f32 %v835, %v852
          %v869 = vadd.f32 %v805, %v853
          %v870 = vadd.f32 %v806, %v854
          %v871 = vadd.f32 %v807, %v855
          %v872 = vadd.f32 %v808, %v856
          %v873 = vadd.f32 %v809, %v857
          %v874 = vadd.f32 %v810, %v858
          %v875 = vadd.f32 %v811, %v859
          %v876 = vadd.f32 %v812, %v860
          %v877 = vadd.f32 %v813, %v861
          %v878 = vadd.f32 %v814, %v862
          %v879 = vadd.f32 %v815, %v863
          %v880 = vadd.f32 %v816, %v864
          %v881 = vadd.f32 %v817, %v865
          %v882 = vadd.f32 %v818, %v866
          %v883 = vadd.f32 %v819, %v867
          %v884 = vadd.f32 %v820, %v868
          %885 = vset.pattern.permute.xlu0 6
          %886 = vperm.xlu0 %885, %v285
          %v887 = vpop.permute.xlu0 %886
          %889 = vset.pattern.permute.xlu0 6
          %890 = vperm.xlu0 %889, %v286
          %v891 = vpop.permute.xlu0 %890
          %893 = vset.pattern.permute.xlu0 6
          %894 = vperm.xlu0 %893, %v287
          %v895 = vpop.permute.xlu0 %894
          %897 = vset.pattern.permute.xlu0 6
          %898 = vperm.xlu0 %897, %v288
          %v899 = vpop.permute.xlu0 %898
          %v901 = vlaneseq
          %v902 = vshrl.u32 %v901, 7
          %v903 = vsub.s32 6, %v902
          %v904 = vrot.slane %v505, %v903
          %v905 = vlaneseq
          %v906 = vshrl.u32 %v905, 7
          %v907 = vsub.s32 6, %v906
          %v908 = vrot.slane %v506, %v907
          %v909 = vlaneseq
          %v910 = vshrl.u32 %v909, 7
          %v911 = vsub.s32 6, %v910
          %v912 = vrot.slane %v507, %v911
          %v913 = vlaneseq
          %v914 = vshrl.u32 %v913, 7
          %v915 = vsub.s32 6, %v914
          %v916 = vrot.slane %v508, %v915
          %v917 = vmul.f32 %v887, %v904
          %v918 = vmul.f32 %v887, %v908
          %v919 = vmul.f32 %v887, %v912
          %v920 = vmul.f32 %v887, %v916
          %v921 = vmul.f32 %v891, %v904
          %v922 = vmul.f32 %v891, %v908
          %v923 = vmul.f32 %v891, %v912
          %v924 = vmul.f32 %v891, %v916
          %v925 = vmul.f32 %v895, %v904
          %v926 = vmul.f32 %v895, %v908
          %v927 = vmul.f32 %v895, %v912
          %v928 = vmul.f32 %v895, %v916
          %v929 = vmul.f32 %v899, %v904
          %v930 = vmul.f32 %v899, %v908
          %v931 = vmul.f32 %v899, %v912
          %v932 = vmul.f32 %v899, %v916
          %v933 = vadd.f32 %v869, %v917
          %v934 = vadd.f32 %v870, %v918
          %v935 = vadd.f32 %v871, %v919
          %v936 = vadd.f32 %v872, %v920
          %v937 = vadd.f32 %v873, %v921
          %v938 = vadd.f32 %v874, %v922
          %v939 = vadd.f32 %v875, %v923
          %v940 = vadd.f32 %v876, %v924
          %v941 = vadd.f32 %v877, %v925
          %v942 = vadd.f32 %v878, %v926
          %v943 = vadd.f32 %v879, %v927
          %v944 = vadd.f32 %v880, %v928
          %v945 = vadd.f32 %v881, %v929
          %v946 = vadd.f32 %v882, %v930
          %v947 = vadd.f32 %v883, %v931
          %v948 = vadd.f32 %v884, %v932
          %949 = vset.pattern.permute.xlu0 7
          %950 = vperm.xlu0 %949, %v285
          %v951 = vpop.permute.xlu0 %950
          %953 = vset.pattern.permute.xlu0 7
          %954 = vperm.xlu0 %953, %v286
          %v955 = vpop.permute.xlu0 %954
          %957 = vset.pattern.permute.xlu0 7
          %958 = vperm.xlu0 %957, %v287
          %v959 = vpop.permute.xlu0 %958
          %961 = vset.pattern.permute.xlu0 7
          %962 = vperm.xlu0 %961, %v288
          %v963 = vpop.permute.xlu0 %962
          %v965 = vlaneseq
          %v966 = vshrl.u32 %v965, 7
          %v967 = vsub.s32 7, %v966
          %v968 = vrot.slane %v505, %v967
          %v969 = vlaneseq
          %v970 = vshrl.u32 %v969, 7
          %v971 = vsub.s32 7, %v970
          %v972 = vrot.slane %v506, %v971
          %v973 = vlaneseq
          %v974 = vshrl.u32 %v973, 7
          %v975 = vsub.s32 7, %v974
          %v976 = vrot.slane %v507, %v975
          %v977 = vlaneseq
          %v978 = vshrl.u32 %v977, 7
          %v979 = vsub.s32 7, %v978
          %v980 = vrot.slane %v508, %v979
          %v981 = vmul.f32 %v951, %v968
          %v982 = vmul.f32 %v951, %v972
          %v983 = vmul.f32 %v951, %v976
          %v984 = vmul.f32 %v951, %v980
          %v985 = vmul.f32 %v955, %v968
          %v986 = vmul.f32 %v955, %v972
          %v987 = vmul.f32 %v955, %v976
          %v988 = vmul.f32 %v955, %v980
          %v989 = vmul.f32 %v959, %v968
          %v990 = vmul.f32 %v959, %v972
          %v991 = vmul.f32 %v959, %v976
          %v992 = vmul.f32 %v959, %v980
          %v993 = vmul.f32 %v963, %v968
          %v994 = vmul.f32 %v963, %v972
          %v995 = vmul.f32 %v963, %v976
          %v996 = vmul.f32 %v963, %v980
          %v997 = vadd.f32 %v933, %v981
          %v998 = vadd.f32 %v934, %v982
          %v999 = vadd.f32 %v935, %v983
          %v1000 = vadd.f32 %v936, %v984
          %v1001 = vadd.f32 %v937, %v985
          %v1002 = vadd.f32 %v938, %v986
          %v1003 = vadd.f32 %v939, %v987
          %v1004 = vadd.f32 %v940, %v988
          %v1005 = vadd.f32 %v941, %v989
          %v1006 = vadd.f32 %v942, %v990
          %v1007 = vadd.f32 %v943, %v991
          %v1008 = vadd.f32 %v944, %v992
          %v1009 = vadd.f32 %v945, %v993
          %v1010 = vadd.f32 %v946, %v994
          %v1011 = vadd.f32 %v947, %v995
          %v1012 = vadd.f32 %v948, %v996
          %1013 = vset.pattern.permute.xlu0 8
          %1014 = vperm.xlu0 %1013, %v285
          %v1015 = vpop.permute.xlu0 %1014
          %1017 = vset.pattern.permute.xlu0 8
          %1018 = vperm.xlu0 %1017, %v286
          %v1019 = vpop.permute.xlu0 %1018
          %1021 = vset.pattern.permute.xlu0 8
          %1022 = vperm.xlu0 %1021, %v287
          %v1023 = vpop.permute.xlu0 %1022
          %1025 = vset.pattern.permute.xlu0 8
          %1026 = vperm.xlu0 %1025, %v288
          %v1027 = vpop.permute.xlu0 %1026
          %v1029 = vlaneseq
          %v1030 = vshrl.u32 %v1029, 7
          %v1031 = vsub.s32 0, %v1030
          %v1032 = vrot.slane %v509, %v1031
          %v1033 = vlaneseq
          %v1034 = vshrl.u32 %v1033, 7
          %v1035 = vsub.s32 0, %v1034
          %v1036 = vrot.slane %v510, %v1035
          %v1037 = vlaneseq
          %v1038 = vshrl.u32 %v1037, 7
          %v1039 = vsub.s32 0, %v1038
          %v1040 = vrot.slane %v511, %v1039
          %v1041 = vlaneseq
          %v1042 = vshrl.u32 %v1041, 7
          %v1043 = vsub.s32 0, %v1042
          %v1044 = vrot.slane %v512, %v1043
          %v1045 = vmul.f32 %v1015, %v1032
          %v1046 = vmul.f32 %v1015, %v1036
          %v1047 = vmul.f32 %v1015, %v1040
          %v1048 = vmul.f32 %v1015, %v1044
          %v1049 = vmul.f32 %v1019, %v1032
          %v1050 = vmul.f32 %v1019, %v1036
          %v1051 = vmul.f32 %v1019, %v1040
          %v1052 = vmul.f32 %v1019, %v1044
          %v1053 = vmul.f32 %v1023, %v1032
          %v1054 = vmul.f32 %v1023, %v1036
          %v1055 = vmul.f32 %v1023, %v1040
          %v1056 = vmul.f32 %v1023, %v1044
          %v1057 = vmul.f32 %v1027, %v1032
          %v1058 = vmul.f32 %v1027, %v1036
          %v1059 = vmul.f32 %v1027, %v1040
          %v1060 = vmul.f32 %v1027, %v1044
          %v1061 = vadd.f32 %v997, %v1045
          %v1062 = vadd.f32 %v998, %v1046
          %v1063 = vadd.f32 %v999, %v1047
          %v1064 = vadd.f32 %v1000, %v1048
          %v1065 = vadd.f32 %v1001, %v1049
          %v1066 = vadd.f32 %v1002, %v1050
          %v1067 = vadd.f32 %v1003, %v1051
          %v1068 = vadd.f32 %v1004, %v1052
          %v1069 = vadd.f32 %v1005, %v1053
          %v1070 = vadd.f32 %v1006, %v1054
          %v1071 = vadd.f32 %v1007, %v1055
          %v1072 = vadd.f32 %v1008, %v1056
          %v1073 = vadd.f32 %v1009, %v1057
          %v1074 = vadd.f32 %v1010, %v1058
          %v1075 = vadd.f32 %v1011, %v1059
          %v1076 = vadd.f32 %v1012, %v1060
          %1077 = vset.pattern.permute.xlu0 9
          %1078 = vperm.xlu0 %1077, %v285
          %v1079 = vpop.permute.xlu0 %1078
          %1081 = vset.pattern.permute.xlu0 9
          %1082 = vperm.xlu0 %1081, %v286
          %v1083 = vpop.permute.xlu0 %1082
          %1085 = vset.pattern.permute.xlu0 9
          %1086 = vperm.xlu0 %1085, %v287
          %v1087 = vpop.permute.xlu0 %1086
          %1089 = vset.pattern.permute.xlu0 9
          %1090 = vperm.xlu0 %1089, %v288
          %v1091 = vpop.permute.xlu0 %1090
          %v1093 = vlaneseq
          %v1094 = vshrl.u32 %v1093, 7
          %v1095 = vsub.s32 1, %v1094
          %v1096 = vrot.slane %v509, %v1095
          %v1097 = vlaneseq
          %v1098 = vshrl.u32 %v1097, 7
          %v1099 = vsub.s32 1, %v1098
          %v1100 = vrot.slane %v510, %v1099
          %v1101 = vlaneseq
          %v1102 = vshrl.u32 %v1101, 7
          %v1103 = vsub.s32 1, %v1102
          %v1104 = vrot.slane %v511, %v1103
          %v1105 = vlaneseq
          %v1106 = vshrl.u32 %v1105, 7
          %v1107 = vsub.s32 1, %v1106
          %v1108 = vrot.slane %v512, %v1107
          %v1109 = vmul.f32 %v1079, %v1096
          %v1110 = vmul.f32 %v1079, %v1100
          %v1111 = vmul.f32 %v1079, %v1104
          %v1112 = vmul.f32 %v1079, %v1108
          %v1113 = vmul.f32 %v1083, %v1096
          %v1114 = vmul.f32 %v1083, %v1100
          %v1115 = vmul.f32 %v1083, %v1104
          %v1116 = vmul.f32 %v1083, %v1108
          %v1117 = vmul.f32 %v1087, %v1096
          %v1118 = vmul.f32 %v1087, %v1100
          %v1119 = vmul.f32 %v1087, %v1104
          %v1120 = vmul.f32 %v1087, %v1108
          %v1121 = vmul.f32 %v1091, %v1096
          %v1122 = vmul.f32 %v1091, %v1100
          %v1123 = vmul.f32 %v1091, %v1104
          %v1124 = vmul.f32 %v1091, %v1108
          %v1125 = vadd.f32 %v1061, %v1109
          %v1126 = vadd.f32 %v1062, %v1110
          %v1127 = vadd.f32 %v1063, %v1111
          %v1128 = vadd.f32 %v1064, %v1112
          %v1129 = vadd.f32 %v1065, %v1113
          %v1130 = vadd.f32 %v1066, %v1114
          %v1131 = vadd.f32 %v1067, %v1115
          %v1132 = vadd.f32 %v1068, %v1116
          %v1133 = vadd.f32 %v1069, %v1117
          %v1134 = vadd.f32 %v1070, %v1118
          %v1135 = vadd.f32 %v1071, %v1119
          %v1136 = vadd.f32 %v1072, %v1120
          %v1137 = vadd.f32 %v1073, %v1121
          %v1138 = vadd.f32 %v1074, %v1122
          %v1139 = vadd.f32 %v1075, %v1123
          %v1140 = vadd.f32 %v1076, %v1124
          %1142 = vset.pattern.permute.xlu0 0
          %1143 = vperm.xlu0 %1142, %v289
          %v1144 = vpop.permute.xlu0 %1143
          %1147 = vset.pattern.permute.xlu0 0
          %1148 = vperm.xlu0 %1147, %v290
          %v1149 = vpop.permute.xlu0 %1148
          %1152 = vset.pattern.permute.xlu0 0
          %1153 = vperm.xlu0 %1152, %v291
          %v1154 = vpop.permute.xlu0 %1153
          %1157 = vset.pattern.permute.xlu0 0
          %1158 = vperm.xlu0 %1157, %v292
          %v1159 = vpop.permute.xlu0 %1158
          %v1161 = vadd.f32 %v1125, %v1144
          %v1162 = vadd.f32 %v1126, %v1144
          %v1163 = vadd.f32 %v1127, %v1144
          %v1164 = vadd.f32 %v1128, %v1144
          %v1165 = vadd.f32 %v1129, %v1149
          %v1166 = vadd.f32 %v1130, %v1149
          %v1167 = vadd.f32 %v1131, %v1149
          %v1168 = vadd.f32 %v1132, %v1149
          %v1169 = vadd.f32 %v1133, %v1154
          %v1170 = vadd.f32 %v1134, %v1154
          %v1171 = vadd.f32 %v1135, %v1154
          %v1172 = vadd.f32 %v1136, %v1154
          %v1173 = vadd.f32 %v1137, %v1159
          %v1174 = vadd.f32 %v1138, %v1159
          %v1175 = vadd.f32 %v1139, %v1159
          %v1176 = vadd.f32 %v1140, %v1159
          %v1177 = vmax.f32 %v1161, 0.0
          %v1178 = vmax.f32 %v1162, 0.0
          %v1179 = vmax.f32 %v1163, 0.0
          %v1180 = vmax.f32 %v1164, 0.0
          %v1181 = vmax.f32 %v1165, 0.0
          %v1182 = vmax.f32 %v1166, 0.0
          %v1183 = vmax.f32 %v1167, 0.0
          %v1184 = vmax.f32 %v1168, 0.0
          %v1185 = vmax.f32 %v1169, 0.0
          %v1186 = vmax.f32 %v1170, 0.0
          %v1187 = vmax.f32 %v1171, 0.0
          %v1188 = vmax.f32 %v1172, 0.0
          %v1189 = vmax.f32 %v1173, 0.0
          %v1190 = vmax.f32 %v1174, 0.0
          %v1191 = vmax.f32 %v1175, 0.0
          %v1192 = vmax.f32 %v1176, 0.0
          %1194 = vset.pattern.permute.xlu0 0
          %1195 = vperm.xlu0 %1194, %v293
          %v1196 = vpop.permute.xlu0 %1195
          %1199 = vset.pattern.permute.xlu0 0
          %1200 = vperm.xlu0 %1199, %v294
          %v1201 = vpop.permute.xlu0 %1200
          %1204 = vset.pattern.permute.xlu0 0
          %1205 = vperm.xlu0 %1204, %v295
          %v1206 = vpop.permute.xlu0 %1205
          %1209 = vset.pattern.permute.xlu0 0
          %1210 = vperm.xlu0 %1209, %v296
          %v1211 = vpop.permute.xlu0 %1210
          %v1213 = vmul.f32 %v1177, %v1196
          %v1214 = vmul.f32 %v1178, %v1196
          %v1215 = vmul.f32 %v1179, %v1196
          %v1216 = vmul.f32 %v1180, %v1196
          %v1217 = vmul.f32 %v1181, %v1201
          %v1218 = vmul.f32 %v1182, %v1201
          %v1219 = vmul.f32 %v1183, %v1201
          %v1220 = vmul.f32 %v1184, %v1201
          %v1221 = vmul.f32 %v1185, %v1206
          %v1222 = vmul.f32 %v1186, %v1206
          %v1223 = vmul.f32 %v1187, %v1206
          %v1224 = vmul.f32 %v1188, %v1206
          %v1225 = vmul.f32 %v1189, %v1211
          %v1226 = vmul.f32 %v1190, %v1211
          %v1227 = vmul.f32 %v1191, %v1211
          %v1228 = vmul.f32 %v1192, %v1211
          %v1229 = vadd.f32 %v1213, %v1217
          %v1230 = vadd.f32 %v1229, %v1221
          %vm1231 = vcmask 1045504
          %v1232 = vsel %vm1231, %v1225, 0.0
          %v1233 = vadd.f32 %v1230, %v1232
          %v1234 = vrot.slane %v1233, 4
          %v1235 = vadd.f32 %v1233, %v1234
          %v1236 = vrot.slane %v1235, 2
          %v1237 = vadd.f32 %v1235, %v1236
          %v1238 = vrot.slane %v1237, 1
          %v1239 = vadd.f32 %v1237, %v1238
          %v1240 = vadd.f32 %v1214, %v1218
          %v1241 = vadd.f32 %v1240, %v1222
          %v1242 = vsel %vm1231, %v1226, 0.0
          %v1243 = vadd.f32 %v1241, %v1242
          %v1244 = vrot.slane %v1243, 4
          %v1245 = vadd.f32 %v1243, %v1244
          %v1246 = vrot.slane %v1245, 2
          %v1247 = vadd.f32 %v1245, %v1246
          %v1248 = vrot.slane %v1247, 1
          %v1249 = vadd.f32 %v1247, %v1248
          %v1250 = vadd.f32 %v1215, %v1219
          %v1251 = vadd.f32 %v1250, %v1223
          %v1252 = vsel %vm1231, %v1227, 0.0
          %v1253 = vadd.f32 %v1251, %v1252
          %v1254 = vrot.slane %v1253, 4
          %v1255 = vadd.f32 %v1253, %v1254
          %v1256 = vrot.slane %v1255, 2
          %v1257 = vadd.f32 %v1255, %v1256
          %v1258 = vrot.slane %v1257, 1
          %v1259 = vadd.f32 %v1257, %v1258
          %v1260 = vadd.f32 %v1216, %v1220
          %v1261 = vadd.f32 %v1260, %v1224
          %v1262 = vsel %vm1231, %v1228, 0.0
          %v1263 = vadd.f32 %v1261, %v1262
          %v1264 = vrot.slane %v1263, 4
          %v1265 = vadd.f32 %v1263, %v1264
          %v1266 = vrot.slane %v1265, 2
          %v1267 = vadd.f32 %v1265, %v1266
          %v1268 = vrot.slane %v1267, 1
          %v1269 = vadd.f32 %v1267, %v1268
          %v1270 = vstv %s297
          %v1271 = vadd.f32 %v1239, %v1270
          %v1272 = vadd.f32 %v1249, %v1270
          %v1273 = vadd.f32 %v1259, %v1270
          %v1274 = vadd.f32 %v1269, %v1270
          %v1279 = vcombine.low %v1271, %v1272
          %v1280 = vcombine.low %v1273, %v1274
          %v1282 = vunpack.c.l.s4 1966171168
          %v1283 = vunpack.c.0.s8 %v1282
          %v1284 = vlaneseq
          %v1285 = vshrl.u32 %v1284, 7
          %v1286 = vsub.s32 %v1283, %v1285
          %v1287 = vrot.slane %v1279, %v1286
          %v1289 = vunpack.c.l.s4 1966171168
          %v1290 = vunpack.c.0.s8 %v1289
          %v1291 = vlaneseq
          %v1292 = vshrl.u32 %v1291, 7
          %v1293 = vsub.s32 %v1290, %v1292
          %v1294 = vrot.slane %v1280, %v1293
          %v1295 = vcombine.low %v1287, %v1294
          %v1297 = vunpack.c.l.s4 1966171168
          %v1298 = vunpack.c.0.s8 %v1297
          %v1299 = vlaneseq
          %v1300 = vshrl.u32 %v1299, 7
          %v1301 = vsub.s32 %v1298, %v1300
          %v1302 = vrot.slane %v1295, %v1301
          %s1304 = scalar_lea.vmem %s273, %s305 [#allocation3]
          %v1305 = vlaneseq
          %vm1306 = vcmp.ge.s32.totalorder %v1305, 0
          %vm1307 = vcmp.lt.s32.totalorder %v1305, 512
          %vm1308 = vmand %vm1306, %vm1307
          %1309 = vst.msk [vmem:[%s1304] sm:$0xf] %vm1308, %v1302
        $region53: #{iris_reg_model.1} parent=47 // loop_footer
          %s303 = sadd.s32 1, %s299
        $region54: #{iris_reg_model.1} parent=47 // loop_footer_branch
          %298 = sbr.rel target = $region50
        $region55: #{iris_reg_model.1} parent=47 // loop_exit
          _
        %s1310 = sand.u32 %s182, 1
        %s1311 = scalar_lea.sflag [#allocation4], %s1310
        %s1312 = sand.u32 %s182, 1
        %s1313 = smul.addr %s1312, 8
        %s1314 = scalar_lea.vmem [#allocation3], %s1313
        // Predicated region
        $region56: #{iris_reg_model.1} parent=47 // pred_check
          %p1315 = pneg %p192
        $region57: #{iris_reg_model.1} parent=47 // pred_check_branch
          %1317 = sbr.rel (%p1315) target = $region59
        $region58: #{iris_reg_model.1} parent=47 // pred_region
          %s1318 = smul.u32 8, %s22
          %s1320 = ssub.s32 128, 128
          %1321 = vsyncadd %s1311, %s1320
          %s1322 = smul.addr %s1318, 16
          %s1323 = scalar_lea.hbm %s7, %s1322
          %s1325 = sshll.u32 %s1314, 4
          %s1326 = int_to_ptr.vmem [resolvable:$true] %s1325
          %1328 = dma.vmem_to_hbm [thread:$0]  %s1326, 128, %s1323, %s1311
        $region59: #{iris_reg_model.1} parent=47 // pred_fallthru
          _
      $region48: #{iris_reg_model.1} parent=5 // pred_fallthru
        _
      %p1329 = scmp.le.s32.totalorder 2, %s17
      // Predicated region
      $region60: #{iris_reg_model.1} parent=5 // pred_check
        %p1330 = pneg %p1329
      $region61: #{iris_reg_model.1} parent=5 // pred_check_branch
        %1332 = sbr.rel (%p1330) target = $region63
      $region62: #{iris_reg_model.1} parent=5 // pred_region
        %s1333 = ssub.s32 %s17, 2
        // Predicated region
        $region64: #{iris_reg_model.1} parent=62 // pred_check
          %p1334 = pneg %p198
        $region65: #{iris_reg_model.1} parent=62 // pred_check_branch
          %1336 = sbr.rel (%p1334) target = $region67
        $region66: #{iris_reg_model.1} parent=62 // pred_region
          %s1337 = sand.u32 %s183, 1
          %s1338 = scalar_lea.sflag [#allocation4], %s1337
          %s1339 = sand.u32 %s183, 1
          %s1340 = smul.addr %s1339, 8
          %s1341 = scalar_lea.vmem [#allocation3], %s1340
          %1342 = dma.done %s1338, 128
        $region67: #{iris_reg_model.1} parent=62 // pred_fallthru
          _
      $region63: #{iris_reg_model.1} parent=5 // pred_fallthru
        _
    $region6: #{iris_reg_model.1} parent=1 // loop_footer
      %s21 = sadd.s32 1, %s17
    $region7: #{iris_reg_model.1} parent=1 // loop_footer_branch
      %16 = sbr.rel target = $region3
    $region8: #{iris_reg_model.1} parent=1 // loop_exit
      _
    %1343 = vsyncpa [#allocation4], 1
    %s1344 = scalar_lea.sflag [#allocation4], 1
    %1345 = vsyncpa %s1344, 1

</llo_original>
